<compile_context>
chip_gen: v7x
topology: tpu7x:2x2x1
jax: 0.10.0
libtpu: 0.0.40
codegen_flags: <defaults>
</compile_context>

<pallas_src>
import functools

import jax
import jax.numpy as jnp
import numpy as np
from jax.experimental import pallas as pl
from jax.experimental.pallas import tpu as pltpu

_LANE = 128                              # lane width; last dim of every block
_MAX_SUB = 512                           # <= 512 sublane-rows -> <= 64K positions per tile
_VMEM_INPUT_BUDGET = 2 * 1024 * 1024     # target bytes per grid step for logits+targets


def _static_pow(x, gamma):
    """x**gamma as a multiply chain when gamma is a small static integer."""
    g = float(gamma)
    if g.is_integer() and 0.0 <= g <= 8.0:
        n = int(g)
        if n == 0:
            return jnp.ones_like(x)
        r = x
        for _ in range(n - 1):
            r = r * x
        return r
    # fractional gamma: clamp so 1-pt ~ -1e-10 can't produce pow(neg, frac) = NaN
    return jnp.maximum(x, 0.0) ** gamma


def _focal_tile_kernel(tgt_ref, x_ref, alpha_ref, fsum_ref, asum_ref,
                       *, gamma, smooth, masked):
    """One (batch, spatial-tile) -> partial sums of the focal term and alpha[target].

    Block shapes seen by the kernel:
      tgt_ref:   (SUB, LANE)     int class ids   (positions on sublane x lane)
      x_ref:     (C, SUB, LANE)  logits          (class axis leading)
      alpha_ref: (C, 1)          per-class weights
      fsum_ref:  (1, 1)          this tile's sum of -(1-pt)^gamma * log(pt)
      asum_ref:  (1, 1)          this tile's sum of alpha[target]
    """
    x = x_ref[...].astype(jnp.float32)                  # (C, SUB, LANE)
    tgt = tgt_ref[...].astype(jnp.int32)                # (SUB, LANE)
    c = x.shape[0]

    # one-hot over the leading class axis (pure VPU compares, full vreg occupancy)
    cls = jax.lax.broadcasted_iota(jnp.int32, x.shape, 0)
    one_hot = (cls == tgt[None]).astype(jnp.float32)    # (C, SUB, LANE)

    # softmax pieces over the class axis: leading-axis reductions lower to C-1
    # elementwise ops on (SUB, LANE) vregs -- no cross-lane / cross-sublane work.
    m = jnp.max(x, axis=0)                              # (SUB, LANE)
    e = jnp.exp(x - m[None])                            # (C, SUB, LANE)
    s = jnp.sum(e, axis=0)                              # (SUB, LANE)
    e_t = jnp.sum(one_hot * e, axis=0)                  # (SUB, LANE)
    pt = e_t / s                                        # probs[target]

    if smooth:
        # clamp(one_hot, s, 1-s) . probs == s + (1-2s)*pt  (softmax rows sum to 1)
        pt = smooth + (1.0 - 2.0 * smooth) * pt
    pt = pt + 1e-10
    logpt = jnp.log(pt)
    focal = -_static_pow(1.0 - pt, gamma) * logpt       # (SUB, LANE)

    if masked:
        # Padded positions carry target == num_class -> their one-hot row is all
        # zero (alpha / counts already correct); only focal must be zeroed.
        focal = jnp.where(tgt < c, focal, 0.0)

    # alpha[target] summed as per-class counts . alpha (no (C,SUB,LANE) multiply)
    counts = jnp.sum(one_hot, axis=2)                   # (C, SUB)
    counts = jnp.sum(counts, axis=1, keepdims=True)     # (C, 1)
    asum_ref[...] = jnp.sum(counts * alpha_ref[...], axis=0, keepdims=True)

    fs = jnp.sum(focal, axis=1, keepdims=True)          # (SUB, 1)
    fsum_ref[...] = jnp.sum(fs, axis=0, keepdims=True)  # (1, 1)


def _choose_sublanes(n_lane, sub_cap):
    """Sublane-rows per spatial tile (positions per tile = sub * 128)."""
    if n_lane <= sub_cap:
        return n_lane                       # single tile; block == full extent
    cap8 = max(8, (sub_cap // 8) * 8)
    floor = max(8, cap8 // 4)
    for s in range(cap8, floor - 1, -8):    # prefer an exact divisor -> no pad copy
        if n_lane % s == 0:
            return s
    return cap8                             # otherwise pad n_lane up to a multiple


def multi_focal_loss(x, target, alpha, *, gamma=2, smooth=None, size_average=True):
    """Forward of MultiFocalLoss.

    x: (B, C, H, W) (or (N, C)) logits -- any float dtype (bf16 stays bf16 in HBM).
    target: matching int class ids, shape (B, H, W) (or (N,)).
    alpha: (C,) per-class weights (already normalized as in the module's __init__).
    """
    num_class = int(x.shape[1])

    if x.ndim > 2:
        b = int(x.shape[0])
        hw = int(np.prod(x.shape[2:]))
        x3 = x.reshape(b, num_class, hw)            # contiguous -> free reshape
        tgt2 = target.reshape(b, hw)
    else:
        # TODO(synk): (N, C) inputs pay one HBM transpose here; not the hot path.
        b = 1
        hw = int(x.shape[0])
        x3 = x.T.reshape(1, num_class, hw)
        tgt2 = target.reshape(1, hw)

    # ---- tile selection: VMEM-budgeted, lane-dense 2-D position layout ----
    n_lane = pl.cdiv(hw, _LANE)
    bytes_per_row = _LANE * 4 * (num_class + 1)     # f32 logits + 4B target per 128 positions
    sub_cap = min(_MAX_SUB, max(8, _VMEM_INPUT_BUDGET // bytes_per_row))
    sub = _choose_sublanes(n_lane, sub_cap)
    n_t = pl.cdiv(n_lane, sub)
    hw_pad = n_t * sub * _LANE
    n_lane_tot = hw_pad // _LANE
    padded = hw_pad != hw

    # ---- target dtype: keep narrow integer dtypes (less HBM traffic), else int32 ----
    tdt = jnp.dtype(tgt2.dtype)
    dtype_ok = (jnp.issubdtype(tdt, jnp.integer)
                and tdt.itemsize <= 4
                and jnp.iinfo(tdt).max >= num_class            # sentinel must fit
                and (tdt.itemsize == 4 or n_t == 1 or sub % 32 == 0))
    if not dtype_ok:
        tgt2 = tgt2.astype(jnp.int32)

    if padded:
        # pad logits with 0 (finite softmax) and targets with num_class (all-zero one-hot)
        pad = hw_pad - hw
        x3 = jnp.pad(x3, ((0, 0), (0, 0), (0, pad)))
        tgt2 = jnp.pad(tgt2, ((0, 0), (0, pad)), constant_values=num_class)

    x4 = x3.reshape(b, num_class, n_lane_tot, _LANE)
    tgt3 = tgt2.reshape(b, n_lane_tot, _LANE)
    alpha2d = jnp.asarray(alpha, jnp.float32).reshape(num_class, 1)

    kernel = functools.partial(_focal_tile_kernel, gamma=gamma, smooth=smooth,
                               masked=padded)

    n_pos = b * hw_pad
    cost = pl.CostEstimate(
        flops=int(n_pos * (12 * num_class + 12)),
        transcendentals=int(n_pos * (num_class + 2)),
        bytes_accessed=int(x4.size * x4.dtype.itemsize
                           + tgt3.size * tgt3.dtype.itemsize
                           + 2 * b * n_t * 4),
    )

    fsum, asum = pl.pallas_call(
        kernel,
        out_shape=(jax.ShapeDtypeStruct((b, n_t, 1, 1), jnp.float32),
                   jax.ShapeDtypeStruct((b, n_t, 1, 1), jnp.float32)),
        grid_spec=pltpu.PrefetchScalarGridSpec(
            num_scalar_prefetch=0,
            grid=(b, n_t),
            in_specs=[
                pl.BlockSpec((None, sub, _LANE),
                             lambda bi, ti: (bi, ti, 0)),                 # targets
                pl.BlockSpec((None, num_class, sub, _LANE),
                             lambda bi, ti: (bi, 0, ti, 0)),              # logits
                pl.BlockSpec((num_class, 1), lambda bi, ti: (0, 0)),      # alpha
            ],
            out_specs=[
                pl.BlockSpec((None, None, 1, 1), lambda bi, ti: (bi, ti, 0, 0)),
                pl.BlockSpec((None, None, 1, 1), lambda bi, ti: (bi, ti, 0, 0)),
            ],
        ),
        compiler_params=pltpu.CompilerParams(
            dimension_semantics=("parallel", "parallel"),
            vmem_limit_bytes=32 * 1024 * 1024),
        cost_estimate=cost,
    )(tgt3, x4, alpha2d)

    f_sum = jnp.sum(fsum)
    a_sum = jnp.sum(asum)
    m_total = jnp.float32(b * hw)
    # Reproduce the torch (M,1,1)*(M,) -> (M,1,M) broadcast reduction exactly:
    #   mean -> sum(alpha[t]) * sum(focal) / M^2 ; sum -> sum(alpha[t]) * sum(focal)
    if size_average:
        return (a_sum * f_sum) / m_total / m_total
    return a_sum * f_sum


def reference_loss(x, target, alpha, *, gamma=2, smooth=None, size_average=True):
    """Pure-JAX re-implementation of the PyTorch forward (incl. its broadcast)."""
    num_class = x.shape[1]
    logit = jax.nn.softmax(x.astype(jnp.float32), axis=1)
    if logit.ndim > 2:
        logit = logit.reshape(logit.shape[0], num_class, -1)
        logit = jnp.moveaxis(logit, 1, 2).reshape(-1, num_class)
    tgt = target.reshape(-1)
    one_hot = jax.nn.one_hot(tgt, num_class, dtype=jnp.float32)
    if smooth:
        one_hot = jnp.clip(one_hot, smooth, 1.0 - smooth)
    pt = jnp.sum(one_hot * logit, axis=1) + 1e-10
    logpt = jnp.log(pt)
    a = jnp.asarray(alpha, jnp.float32).reshape(-1)[tgt]   # (M,)
    f = -((1.0 - pt) ** gamma) * logpt                     # (M,)
    loss = a[:, None, None] * f[None, None, :]             # (M,1,M) -- torch broadcast
    return loss.mean() if size_average else loss.sum()


if __name__ == "__main__":
    num_class = 4
    B, H, W = 2, 16, 16                              # M = 512 positions

    key = jax.random.PRNGKey(0)
    kx, kt = jax.random.split(key)
    x = jax.random.normal(kx, (B, num_class, H, W), dtype=jnp.float32)
    target = jax.random.randint(kt, (B, H, W), 0, num_class, dtype=jnp.int32)

    # __init__ with alpha as a list: FloatTensor(alpha).view(C,1); alpha /= alpha.sum()
    alpha = jnp.array([1.0, 2.0, 3.0, 4.0], dtype=jnp.float32)
    alpha = alpha / alpha.sum()
    gamma = 2

    # Default config: smooth=None, size_average=True
    loss = multi_focal_loss(x, target, alpha, gamma=gamma, smooth=None,
                            size_average=True)
    loss = jax.block_until_ready(loss)
    ref = jax.block_until_ready(
        reference_loss(x, target, alpha, gamma=gamma, smooth=None, size_average=True))
    np.testing.assert_allclose(np.asarray(loss), np.asarray(ref), rtol=1e-5, atol=1e-6)

    # Smoothed-label path
    loss_s = jax.block_until_ready(
        multi_focal_loss(x, target, alpha, gamma=gamma, smooth=0.1, size_average=True))
    ref_s = jax.block_until_ready(
        reference_loss(x, target, alpha, gamma=gamma, smooth=0.1, size_average=True))
    np.testing.assert_allclose(np.asarray(loss_s), np.asarray(ref_s), rtol=1e-5, atol=1e-6)

    # Non-128-multiple spatial extent exercises the padded (masked) path
    H2, W2 = 10, 10
    kx2, kt2 = jax.random.split(kt)
    x2 = jax.random.normal(kx2, (B, num_class, H2, W2), dtype=jnp.float32)
    t2 = jax.random.randint(kt2, (B, H2, W2), 0, num_class, dtype=jnp.int32)
    loss_p = jax.block_until_ready(
        multi_focal_loss(x2, t2, alpha, gamma=gamma, smooth=None, size_average=True))
    ref_p = jax.block_until_ready(
        reference_loss(x2, t2, alpha, gamma=gamma, smooth=None, size_average=True))
    np.testing.assert_allclose(np.asarray(loss_p), np.asarray(ref_p), rtol=1e-5, atol=1e-6)

    print("KERNEL_OK")
</pallas_src>

<mosaic_0001>
module attributes {stable_mosaic.version = 11 : i64} {
  func.func @_focal_tile_kernel(%arg0: i32, %arg1: i32, %arg2: memref<1x2x128xi32, #tpu.memory_space<vmem>>, %arg3: memref<1x4x2x128xf32, #tpu.memory_space<vmem>>, %arg4: memref<4x1xf32, #tpu.memory_space<vmem>>, %arg5: memref<1x1x1x1xf32, #tpu.memory_space<vmem>>, %arg6: memref<1x1x1x1xf32, #tpu.memory_space<vmem>>) attributes {dimension_semantics = [#tpu.dimension_semantics<parallel>, #tpu.dimension_semantics<parallel>], iteration_bounds = array<i64: 2, 1>, scalar_prefetch = 0 : i64, scratch_operands = 0 : i64, tpu.core_type = #tpu.core_type<tc>, window_params = [{transform_indices = @transform_0, window_bounds = array<i64: 1, 2, 128>}, {transform_indices = @transform_1, window_bounds = array<i64: 1, 4, 2, 128>}, {pipeline_mode = #tpu.pipeline_mode<synchronous>, transform_indices = @transform_2, window_bounds = array<i64: 4, 1>}, {transform_indices = @transform_3, window_bounds = array<i64: 1, 1, 1, 1>}, {transform_indices = @transform_4, window_bounds = array<i64: 1, 1, 1, 1>}]} {
    %c0 = arith.constant 0 : index
    %c0_0 = arith.constant 0 : index
    %c0_1 = arith.constant 0 : index
    %c0_2 = arith.constant 0 : index
    %0 = vector.load %arg3[%c0, %c0_0, %c0_1, %c0_2] : memref<1x4x2x128xf32, #tpu.memory_space<vmem>>, vector<1x4x2x128xf32>
    %1 = vector.shape_cast %0 : vector<1x4x2x128xf32> to vector<4x2x128xf32>
    %c0_3 = arith.constant 0 : index
    %c0_4 = arith.constant 0 : index
    %c0_5 = arith.constant 0 : index
    %2 = vector.load %arg2[%c0_3, %c0_4, %c0_5] : memref<1x2x128xi32, #tpu.memory_space<vmem>>, vector<1x2x128xi32>
    %3 = vector.shape_cast %2 : vector<1x2x128xi32> to vector<2x128xi32>
    %4 = tpu.iota {dimensions = array<i32: 0>} : vector<4x2x128xi32>
    %5 = vector.shape_cast %3 : vector<2x128xi32> to vector<1x2x128xi32>
    %6 = vector.broadcast %5 : vector<1x2x128xi32> to vector<4x2x128xi32>
    %7 = arith.cmpi eq, %4, %6 : vector<4x2x128xi32>
    %8 = arith.extui %7 : vector<4x2x128xi1> to vector<4x2x128xi32>
    %9 = arith.sitofp %8 : vector<4x2x128xi32> to vector<4x2x128xf32>
    %cst = arith.constant dense<0xFF800000> : vector<2x128xf32>
    %10 = vector.multi_reduction <maximumf>, %1, %cst [0] : vector<4x2x128xf32> to vector<2x128xf32>
    %11 = vector.shape_cast %10 : vector<2x128xf32> to vector<1x2x128xf32>
    %12 = vector.broadcast %11 : vector<1x2x128xf32> to vector<4x2x128xf32>
    %13 = arith.subf %1, %12 : vector<4x2x128xf32>
    %14 = math.exp %13 : vector<4x2x128xf32>
    %cst_6 = arith.constant dense<0.000000e+00> : vector<2x128xf32>
    %15 = vector.multi_reduction <add>, %14, %cst_6 [0] : vector<4x2x128xf32> to vector<2x128xf32>
    %16 = arith.mulf %9, %14 : vector<4x2x128xf32>
    %cst_7 = arith.constant dense<0.000000e+00> : vector<2x128xf32>
    %17 = vector.multi_reduction <add>, %16, %cst_7 [0] : vector<4x2x128xf32> to vector<2x128xf32>
    %18 = arith.divf %17, %15 : vector<2x128xf32>
    %cst_8 = arith.constant 1.000000e-10 : f32
    %19 = vector.broadcast %cst_8 : f32 to vector<2x128xf32>
    %20 = arith.addf %18, %19 : vector<2x128xf32>
    %21 = math.log %20 : vector<2x128xf32>
    %cst_9 = arith.constant 1.000000e+00 : f32
    %22 = vector.broadcast %cst_9 : f32 to vector<2x128xf32>
    %23 = arith.subf %22, %20 : vector<2x128xf32>
    %24 = arith.mulf %23, %23 : vector<2x128xf32>
    %cst_10 = arith.constant 0.000000e+00 : f32
    %25 = vector.broadcast %cst_10 : f32 to vector<2x128xf32>
    %26 = arith.subf %25, %24 : vector<2x128xf32>
    %27 = arith.mulf %26, %21 : vector<2x128xf32>
    %cst_11 = arith.constant dense<0.000000e+00> : vector<4x2xf32>
    %28 = vector.multi_reduction <add>, %9, %cst_11 [2] : vector<4x2x128xf32> to vector<4x2xf32>
    %cst_12 = arith.constant dense<0.000000e+00> : vector<4xf32>
    %29 = vector.multi_reduction <add>, %28, %cst_12 [1] : vector<4x2xf32> to vector<4xf32>
    %30 = vector.shape_cast %29 : vector<4xf32> to vector<4x1xf32>
    %c0_13 = arith.constant 0 : index
    %c0_14 = arith.constant 0 : index
    %31 = vector.load %arg4[%c0_13, %c0_14] : memref<4x1xf32, #tpu.memory_space<vmem>>, vector<4x1xf32>
    %32 = arith.mulf %30, %31 : vector<4x1xf32>
    %cst_15 = arith.constant dense<0.000000e+00> : vector<1xf32>
    %33 = vector.multi_reduction <add>, %32, %cst_15 [0] : vector<4x1xf32> to vector<1xf32>
    %34 = vector.shape_cast %33 : vector<1xf32> to vector<1x1xf32>
    %c0_16 = arith.constant 0 : index
    %c0_17 = arith.constant 0 : index
    %c0_18 = arith.constant 0 : index
    %c0_19 = arith.constant 0 : index
    %35 = vector.load %arg6[%c0_16, %c0_17, %c0_18, %c0_19] : memref<1x1x1x1xf32, #tpu.memory_space<vmem>>, vector<1x1x1x1xf32>
    %36 = vector.shape_cast %35 : vector<1x1x1x1xf32> to vector<1x1xf32>
    %37 = vector.shape_cast %34 : vector<1x1xf32> to vector<1x1x1x1xf32>
    tpu.vector_store %arg6[%c0_16, %c0_17, %c0_18, %c0_19], %37 {strides = array<i32>} : memref<1x1x1x1xf32, #tpu.memory_space<vmem>>, vector<1x1x1x1xf32>,
    %cst_20 = arith.constant dense<0.000000e+00> : vector<2xf32>
    %38 = vector.multi_reduction <add>, %27, %cst_20 [1] : vector<2x128xf32> to vector<2xf32>
    %39 = vector.shape_cast %38 : vector<2xf32> to vector<2x1xf32>
    %cst_21 = arith.constant dense<0.000000e+00> : vector<1xf32>
    %40 = vector.multi_reduction <add>, %39, %cst_21 [0] : vector<2x1xf32> to vector<1xf32>
    %41 = vector.shape_cast %40 : vector<1xf32> to vector<1x1xf32>
    %c0_22 = arith.constant 0 : index
    %c0_23 = arith.constant 0 : index
    %c0_24 = arith.constant 0 : index
    %c0_25 = arith.constant 0 : index
    %42 = vector.load %arg5[%c0_22, %c0_23, %c0_24, %c0_25] : memref<1x1x1x1xf32, #tpu.memory_space<vmem>>, vector<1x1x1x1xf32>
    %43 = vector.shape_cast %42 : vector<1x1x1x1xf32> to vector<1x1xf32>
    %44 = vector.shape_cast %41 : vector<1x1xf32> to vector<1x1x1x1xf32>
    tpu.vector_store %arg5[%c0_22, %c0_23, %c0_24, %c0_25], %44 {strides = array<i32>} : memref<1x1x1x1xf32, #tpu.memory_space<vmem>>, vector<1x1x1x1xf32>,
    return
  }
  func.func @transform_0(%arg0: i32, %arg1: i32) -> (i32, i32, i32) {
    %c0_i32 = arith.constant 0 : i32
    %c0_i32_0 = arith.constant 0 : i32
    return %arg0, %arg1, %c0_i32 : i32, i32, i32
  }
  func.func @transform_1(%arg0: i32, %arg1: i32) -> (i32, i32, i32, i32) {
    %c0_i32 = arith.constant 0 : i32
    %c0_i32_0 = arith.constant 0 : i32
    %c0_i32_1 = arith.constant 0 : i32
    return %arg0, %c0_i32, %arg1, %c0_i32_0 : i32, i32, i32, i32
  }
  func.func @transform_2(%arg0: i32, %arg1: i32) -> (i32, i32) {
    %c0_i32 = arith.constant 0 : i32
    %c0_i32_0 = arith.constant 0 : i32
    %c0_i32_1 = arith.constant 0 : i32
    return %c0_i32, %c0_i32_0 : i32, i32
  }
  func.func @transform_3(%arg0: i32, %arg1: i32) -> (i32, i32, i32, i32) {
    %c0_i32 = arith.constant 0 : i32
    %c0_i32_0 = arith.constant 0 : i32
    %c0_i32_1 = arith.constant 0 : i32
    return %arg0, %arg1, %c0_i32, %c0_i32_0 : i32, i32, i32, i32
  }
  func.func @transform_4(%arg0: i32, %arg1: i32) -> (i32, i32, i32, i32) {
    %c0_i32 = arith.constant 0 : i32
    %c0_i32_0 = arith.constant 0 : i32
    %c0_i32_1 = arith.constant 0 : i32
    return %arg0, %arg1, %c0_i32, %c0_i32_0 : i32, i32, i32, i32
  }
}

</mosaic_0001>

<llo_original>
// kernel: tpu_custom_call.1
$region0: #{tpu_custom_call.1}
  #allocation0 [shape = 'u32[]', space=smem, size = 0x4, offset = 0x4, fixed_abs, tag = 'smem constant byte address 0x4 - core index']
  #allocation1 [shape = 'u32[144,128]{1,0:T(1,128)}', space=vmem, size = 0x12000, scoped, tag = 'internal scratch']
  %s0 = inlined_call_operand.vmem [shape: s32[2,2,128], index: 0, kind: input, shape index: {}]
  %s1 = inlined_call_operand.hbm [shape: f32[2,4,2,128], index: 1, kind: input, shape index: {}]
  %s2 = inlined_call_operand.vmem [shape: f32[4,1], index: 2, kind: input, shape index: {}]
  %s3 = inlined_call_operand.vmem [shape: f32[2,1,1,1], index: 3, kind: output, shape index: {0}]
  %s4 = inlined_call_operand.vmem [shape: f32[2,1,1,1], index: 4, kind: output, shape index: {1}]
  %5 = xla_tuple %s3, %s4
  %s6 = sld [smem:[#allocation0]]
  $region57: #{tpu_custom_call.1} parent=0
    _
  %s8 = ssub.s32 1, %s6
  %s9 = scalar_select 0, %s8, %s6
  $region1: #{tpu_custom_call.1} parent=0
    #allocation2 [shape = 'u8[8192]{0}', space=vmem, size = 0x2000, scoped, tag = 'input window, operand 1']
    #allocation3 [shape = 's32[2]{0}', space=sflag, size = 0x8, scoped, tag = 'scoped memory for tpu_custom_call.1']
    %10 = vsyncpa [#allocation3], 0
    %s11 = scalar_lea.sflag [#allocation3], 1
    %12 = vsyncpa %s11, 0
    loop: start=0, step=1, limit=4
    $region2: #{tpu_custom_call.1} parent=1 // loop_pre_header
      _
    $region3: #{tpu_custom_call.1} parent=1 // loop_header
      %s14 = sphi 0, %s18
      %p15 = scmp.ge.s32.totalorder %s14, 4
      %s21 = sphi 0, %s33
      %s22 = sphi 0, %s29
      %s23 = sphi 0, %s21
      %s24 = sphi 0, %s22
      %s25 = sphi 0, %s23
      %s26 = sphi 0, %s24
      %s38 = sphi 0, %s40
      %s41 = sphi 0, %s38
      %s42 = sphi 0, %s41
      %s58 = sphi 0, %s42
      %s66 = sphi 0, %s68
      %s69 = sphi 0, %s66
      %s70 = sphi 0, %s69
      %s86 = sphi 0, %s70
      %s90 = sphi 0, %s90
      %s92 = sphi 0, %s90
      %s93 = sphi 0, %s92
      %s107 = sphi 0, %s93
      %s115 = sphi 0, %s117
      %s118 = sphi 0, %s115
      %s119 = sphi 0, %s118
      %s135 = sphi 0, %s119
      %s143 = sphi 0, %s145
      %s146 = sphi 0, %s143
      %s147 = sphi 0, %s146
      %s163 = sphi 0, %s147
    $region4: #{tpu_custom_call.1} parent=1 // loop_header_branch
      %17 = sbr.rel (%p15) target = $region8
    $region5: #{tpu_custom_call.1} parent=1 // loop_body
      %s19 = ssub.s32 %s14, 1
      %s20 = ssub.s32 %s14, 2
      %s27 = sadd.s32 1, %s22
      %p28 = scmp.ge.s32.totalorder %s27, 1
      %s29 = scalar_select %p28, 0, %s27
      %s30 = sadd.s32 1, %s21
      %s31 = scalar_select %p28, %s30, %s21
      %p32 = scmp.ge.s32.totalorder %s31, 2
      %s33 = scalar_select %p32, 0, %s31
      %s34 = ssub.s32 %s21, %s33
      %s35 = ssub.s32 %s22, %s29
      %s36 = sor.u32 %s34, %s35
      %p37 = scmp.eq.s32.totalorder %s36, 0
      %s39 = sadd.s32 %s38, 1
      %s40 = scalar_select %p37, %s38, %s39
      %p43 = pneg %p37
      %p44 = scmp.eq.s32.totalorder %s14, 1
      %p45 = por %p43, %p44
      %p46 = scmp.ne.s32.totalorder %s38, %s41
      %p47 = scmp.eq.s32.totalorder %s14, 0
      %p48 = por %p46, %p47
      %p49 = scmp.ne.s32.totalorder %s38, %s41
      %p50 = scmp.eq.s32.totalorder %s19, 1
      %p51 = por %p49, %p50
      %p52 = scmp.ne.s32.totalorder %s41, %s42
      %p53 = scmp.eq.s32.totalorder %s19, 0
      %p54 = por %p52, %p53
      %p55 = scmp.ne.s32.totalorder %s41, %s42
      %p56 = scmp.eq.s32.totalorder %s20, 1
      %p57 = por %p55, %p56
      %p59 = scmp.ne.s32.totalorder %s42, %s58
      %p60 = scmp.eq.s32.totalorder %s20, 0
      %p61 = por %p59, %p60
      %s62 = ssub.s32 %s21, %s33
      %s63 = ssub.s32 %s22, %s29
      %s64 = sor.u32 %s62, %s63
      %p65 = scmp.eq.s32.totalorder %s64, 0
      %s67 = sadd.s32 %s66, 1
      %s68 = scalar_select %p65, %s66, %s67
      %p71 = pneg %p65
      %p72 = scmp.eq.s32.totalorder %s14, 1
      %p73 = por %p71, %p72
      %p74 = scmp.ne.s32.totalorder %s66, %s69
      %p75 = scmp.eq.s32.totalorder %s14, 0
      %p76 = por %p74, %p75
      %p77 = scmp.ne.s32.totalorder %s66, %s69
      %p78 = scmp.eq.s32.totalorder %s19, 1
      %p79 = por %p77, %p78
      %p80 = scmp.ne.s32.totalorder %s69, %s70
      %p81 = scmp.eq.s32.totalorder %s19, 0
      %p82 = por %p80, %p81
      %p83 = scmp.ne.s32.totalorder %s69, %s70
      %p84 = scmp.eq.s32.totalorder %s20, 1
      %p85 = por %p83, %p84
      %p87 = scmp.ne.s32.totalorder %s70, %s86
      %p88 = scmp.eq.s32.totalorder %s20, 0
      %p89 = por %p87, %p88
      %s91 = sadd.s32 %s90, 1
      %p94 = scmp.eq.s32.totalorder %s14, 1
      %p95 = scmp.ne.s32.totalorder %s90, %s92
      %p96 = scmp.eq.s32.totalorder %s14, 0
      %p97 = por %p95, %p96
      %p98 = scmp.ne.s32.totalorder %s90, %s92
      %p99 = scmp.eq.s32.totalorder %s19, 1
      %p100 = por %p98, %p99
      %p101 = scmp.ne.s32.totalorder %s92, %s93
      %p102 = scmp.eq.s32.totalorder %s19, 0
      %p103 = por %p101, %p102
      %p104 = scmp.ne.s32.totalorder %s92, %s93
      %p105 = scmp.eq.s32.totalorder %s20, 1
      %p106 = por %p104, %p105
      %p108 = scmp.ne.s32.totalorder %s93, %s107
      %p109 = scmp.eq.s32.totalorder %s20, 0
      %p110 = por %p108, %p109
      %s111 = ssub.s32 %s21, %s33
      %s112 = ssub.s32 %s22, %s29
      %s113 = sor.u32 %s111, %s112
      %p114 = scmp.eq.s32.totalorder %s113, 0
      %s116 = sadd.s32 %s115, 1
      %s117 = scalar_select %p114, %s115, %s116
      %p120 = pneg %p114
      %p121 = scmp.eq.s32.totalorder %s14, 1
      %p122 = por %p120, %p121
      %p123 = scmp.ne.s32.totalorder %s115, %s118
      %p124 = scmp.eq.s32.totalorder %s14, 0
      %p125 = por %p123, %p124
      %p126 = scmp.ne.s32.totalorder %s115, %s118
      %p127 = scmp.eq.s32.totalorder %s19, 1
      %p128 = por %p126, %p127
      %p129 = scmp.ne.s32.totalorder %s118, %s119
      %p130 = scmp.eq.s32.totalorder %s19, 0
      %p131 = por %p129, %p130
      %p132 = scmp.ne.s32.totalorder %s118, %s119
      %p133 = scmp.eq.s32.totalorder %s20, 1
      %p134 = por %p132, %p133
      %p136 = scmp.ne.s32.totalorder %s119, %s135
      %p137 = scmp.eq.s32.totalorder %s20, 0
      %p138 = por %p136, %p137
      %s139 = ssub.s32 %s21, %s33
      %s140 = ssub.s32 %s22, %s29
      %s141 = sor.u32 %s139, %s140
      %p142 = scmp.eq.s32.totalorder %s141, 0
      %s144 = sadd.s32 %s143, 1
      %s145 = scalar_select %p142, %s143, %s144
      %p148 = pneg %p142
      %p149 = scmp.eq.s32.totalorder %s14, 1
      %p150 = por %p148, %p149
      %p151 = scmp.ne.s32.totalorder %s143, %s146
      %p152 = scmp.eq.s32.totalorder %s14, 0
      %p153 = por %p151, %p152
      %p154 = scmp.ne.s32.totalorder %s143, %s146
      %p155 = scmp.eq.s32.totalorder %s19, 1
      %p156 = por %p154, %p155
      %p157 = scmp.ne.s32.totalorder %s146, %s147
      %p158 = scmp.eq.s32.totalorder %s19, 0
      %p159 = por %p157, %p158
      %p160 = scmp.ne.s32.totalorder %s146, %s147
      %p161 = scmp.eq.s32.totalorder %s20, 1
      %p162 = por %p160, %p161
      %p164 = scmp.ne.s32.totalorder %s147, %s163
      %p165 = scmp.eq.s32.totalorder %s20, 0
      %p166 = por %p164, %p165
      %p167 = scmp.le.s32.totalorder 1, %s14
      %p168 = scmp.lt.s32.totalorder %s14, 3
      %p169 = pnand %p167, %p168
      %p170 = pneg %p169
      // Predicated region
      $region9: #{tpu_custom_call.1} parent=5 // pred_check
        _
      $region10: #{tpu_custom_call.1} parent=5 // pred_check_branch
        %172 = sbr.rel (%p169) target = $region12
      $region11: #{tpu_custom_call.1} parent=5 // pred_region
        %s173 = ssub.s32 %s14, 1
        // Predicated region
        $region13: #{tpu_custom_call.1} parent=11 // pred_check
          %p174 = pneg %p103
        $region14: #{tpu_custom_call.1} parent=11 // pred_check_branch
          %176 = sbr.rel (%p174) target = $region16
        $region15: #{tpu_custom_call.1} parent=11 // pred_region
          _
        $region16: #{tpu_custom_call.1} parent=11 // pred_fallthru
          _
      $region12: #{tpu_custom_call.1} parent=5 // pred_fallthru
        _
      %p177 = scmp.lt.s32.totalorder %s14, 2
      // Predicated region
      $region17: #{tpu_custom_call.1} parent=5 // pred_check
        %p178 = pneg %p177
      $region18: #{tpu_custom_call.1} parent=5 // pred_check_branch
        %180 = sbr.rel (%p178) target = $region20
      $region19: #{tpu_custom_call.1} parent=5 // pred_region
        // Predicated region
        $region21: #{tpu_custom_call.1} parent=19 // pred_check
          %p181 = pneg %p48
        $region22: #{tpu_custom_call.1} parent=19 // pred_check_branch
          %183 = sbr.rel (%p181) target = $region24
        $region23: #{tpu_custom_call.1} parent=19 // pred_region
          %p184 = scmp.lt.s32.totalorder %s21, 1
          %s185 = scalar_select %p184, %s21, 1
          %p186 = scmp.lt.s32.totalorder %s22, 0
          %s187 = scalar_select %p186, %s22, 0
          %s188 = sadd.s32 %s187, %s185
          %s189 = smul.addr %s188, 2
          %s190 = scalar_lea.vmem %s0, %s189
        $region24: #{tpu_custom_call.1} parent=19 // pred_fallthru
          _
        // Predicated region
        $region25: #{tpu_custom_call.1} parent=19 // pred_check
          %p191 = pneg %p76
        $region26: #{tpu_custom_call.1} parent=19 // pred_check_branch
          %193 = sbr.rel (%p191) target = $region28
        $region27: #{tpu_custom_call.1} parent=19 // pred_region
          %s194 = sand.u32 %s66, 1
          %s195 = scalar_lea.sflag [#allocation3], %s194
          %s196 = sand.u32 %s66, 1
          %s197 = smul.addr %s196, 8
          %s198 = scalar_lea.vmem [#allocation2], %s197
          %s200 = ssub.s32 128, 128
          %201 = vsyncadd %s195, %s200
          %s202 = smul.addr %s21, 4
          %s203 = sadd.s32 %s22, %s202
          %s204 = smul.addr %s203, 32
          %s205 = scalar_lea.hbm %s1, %s204
          %s206 = sshll.u32 %s198, 4
          %s207 = int_to_ptr.vmem [resolvable:$true] %s206
          %212 = dma.hbm_to_vmem [thread:$0]  %s205, 128, %s207, %s195, 32, 32, 2
        $region28: #{tpu_custom_call.1} parent=19 // pred_fallthru
          _
      $region20: #{tpu_custom_call.1} parent=5 // pred_fallthru
        _
      %p213 = scmp.le.s32.totalorder 1, %s14
      %p214 = scmp.lt.s32.totalorder %s14, 3
      %p215 = pnand %p213, %p214
      %p216 = pneg %p215
      // Predicated region
      $region29: #{tpu_custom_call.1} parent=5 // pred_check
        _
      $region30: #{tpu_custom_call.1} parent=5 // pred_check_branch
        %218 = sbr.rel (%p215) target = $region32
      $region31: #{tpu_custom_call.1} parent=5 // pred_region
        %s219 = ssub.s32 %s14, 1
        %s220 = sand.u32 %s69, 1
        %s221 = scalar_lea.sflag [#allocation3], %s220
        %s222 = sand.u32 %s69, 1
        %s223 = smul.addr %s222, 8
        %s224 = scalar_lea.vmem [#allocation2], %s223
        // Predicated region
        $region33: #{tpu_custom_call.1} parent=31 // pred_check
          %p225 = pneg %p82
        $region34: #{tpu_custom_call.1} parent=31 // pred_check_branch
          %227 = sbr.rel (%p225) target = $region36
        $region35: #{tpu_custom_call.1} parent=31 // pred_region
          %228 = dma.done %s221, 128
        $region36: #{tpu_custom_call.1} parent=31 // pred_fallthru
          _
        %p229 = scmp.lt.s32.totalorder %s23, 1
        %s230 = scalar_select %p229, %s23, 1
        %p231 = scmp.lt.s32.totalorder %s24, 0
        %s232 = scalar_select %p231, %s24, 0
        %s233 = sadd.s32 %s232, %s230
        %s234 = smul.addr %s233, 2
        %s235 = scalar_lea.vmem %s0, %s234
        %p236 = pneg %p54
        %p237 = pneg %p51
        %s238 = sand.u32 %s69, 1
        %s239 = scalar_lea.sflag [#allocation3], %s238
        %s240 = sand.u32 %s69, 1
        %s241 = smul.addr %s240, 8
        %s242 = scalar_lea.vmem [#allocation2], %s241
        %p243 = pneg %p82
        %p244 = pneg %p79
        %p245 = pneg %p103
        %p246 = pneg %p100
        %p247 = pneg %p131
        %p248 = pneg %p128
        %p249 = scmp.lt.s32.totalorder %s23, 1
        %s250 = scalar_select %p249, %s23, 1
        %p251 = scmp.lt.s32.totalorder %s24, 0
        %s252 = scalar_select %p251, %s24, 0
        %s253 = sadd.s32 %s252, %s250
        %s254 = scalar_lea.vmem %s3, %s253
        %p255 = pneg %p159
        %p256 = pneg %p156
        %p257 = scmp.lt.s32.totalorder %s23, 1
        %s258 = scalar_select %p257, %s23, 1
        %p259 = scmp.lt.s32.totalorder %s24, 0
        %s260 = scalar_select %p259, %s24, 0
        %s261 = sadd.s32 %s260, %s258
        %s262 = scalar_lea.vmem %s4, %s261
        %p263 = scmp.lt.s32.totalorder %s23, 1
        %s264 = scalar_select %p263, %s23, 1
        %p265 = scmp.lt.s32.totalorder %s24, 0
        %s266 = scalar_select %p265, %s24, 0
        %s267 = sadd.s32 %s266, %s264
        %s268 = smul.addr %s267, 2
        %s269 = scalar_lea.vmem %s0, %s268
        %p270 = scmp.lt.s32.totalorder %s23, 1
        %s271 = scalar_select %p270, %s23, 1
        %p272 = scmp.lt.s32.totalorder %s24, 0
        %s273 = scalar_select %p272, %s24, 0
        %s274 = sadd.s32 %s273, %s271
        %s275 = scalar_lea.vmem %s3, %s274
        %p276 = scmp.lt.s32.totalorder %s23, 1
        %s277 = scalar_select %p276, %s23, 1
        %p278 = scmp.lt.s32.totalorder %s24, 0
        %s279 = scalar_select %p278, %s24, 0
        %s280 = sadd.s32 %s279, %s277
        %s281 = scalar_lea.vmem %s4, %s280
        %v282 = vld [vmem:[%s224] sm:$0x3]
        %v283 = vld [vmem:[%s224 + $0x2] sm:$0x3]
        %v284 = vld [vmem:[%s224 + $0x4] sm:$0x3]
        %v285 = vld [vmem:[%s224 + $0x6] sm:$0x3]
        %v286 = vld [vmem:[%s269] sm:$0x3]
        %vm287 = vcmp.eq.s32.totalorder %v286, 0
        %vm288 = vcmp.eq.s32.totalorder %v286, 1
        %vm289 = vcmp.eq.s32.totalorder %v286, 2
        %vm290 = vcmp.eq.s32.totalorder %v286, 3
        %v291 = vsel %vm287, 1, 0
        %v292 = vsel %vm288, 1, 0
        %v293 = vsel %vm289, 1, 0
        %v294 = vsel %vm290, 1, 0
        %v295 = vcvt.s32.f32 %v291
        %v296 = vcvt.s32.f32 %v292
        %v297 = vcvt.s32.f32 %v293
        %v298 = vcvt.s32.f32 %v294
        %vm299 = vcmask 1041408
        %v300 = vsel %vm299, %v282, -inf
        %v301 = vsel %vm299, %v283, -inf
        %v302 = vsel %vm299, %v284, -inf
        %v303 = vsel %vm299, %v285, -inf
        %v304 = vmax.f32 %v300, %v301
        %v305 = vmax.f32 %v302, %v303
        %v306 = vmax.f32 %v304, %v305
        %v307 = vsub.f32 %v282, %v306
        %v308 = vsub.f32 %v283, %v306
        %v309 = vsub.f32 %v284, %v306
        %v310 = vsub.f32 %v285, %v306
        %v311 = vmul.f32 %v307, 1.442695
        %v312 = vpow.pop %v311
        %v313 = vmul.f32 %v308, 1.442695
        %v314 = vpow.pop %v313
        %v315 = vmul.f32 %v309, 1.442695
        %v316 = vpow.pop %v315
        %v317 = vmul.f32 %v310, 1.442695
        %v318 = vpow.pop %v317
        %v319 = vsel %vm299, %v312, 0.0
        %v320 = vsel %vm299, %v314, 0.0
        %v321 = vadd.f32 %v319, %v320
        %v322 = vsel %vm299, %v316, 0.0
        %v323 = vadd.f32 %v321, %v322
        %v324 = vsel %vm299, %v318, 0.0
        %v325 = vadd.f32 %v323, %v324
        %v326 = vmul.f32 %v295, %v312
        %v327 = vmul.f32 %v296, %v314
        %v328 = vmul.f32 %v297, %v316
        %v329 = vmul.f32 %v298, %v318
        %v330 = vsel %vm299, %v326, 0.0
        %v331 = vsel %vm299, %v327, 0.0
        %v332 = vadd.f32 %v330, %v331
        %v333 = vsel %vm299, %v328, 0.0
        %v334 = vadd.f32 %v332, %v333
        %v335 = vsel %vm299, %v329, 0.0
        %v336 = vadd.f32 %v334, %v335
        %v337 = vrcp.pop %v325
        %v338 = vmul.f32 %v336, %v337
        %v339 = vadd.f32 %v338, 1e-10
        %v340 = vlog2.pop %v339
        %v341 = vmul.f32 %v340, 0.6931472
        %v342 = vsub.f32 1.0, %v339
        %v343 = vmul.f32 %v342, %v342
        %v344 = vsub.f32 0.0, %v343
        %v345 = vmul.f32 %v344, %v341
        %v346 = vsel %vm299, %v295, 0.0
        %347 = vadd.xlane.f32.xlu0 %v346
        %v348 = vpop.xlane.xlu0 %347
        %v349 = vsel %vm299, %v296, 0.0
        %350 = vadd.xlane.f32.xlu0 %v349
        %v351 = vpop.xlane.xlu0 %350
        %v352 = vsel %vm299, %v297, 0.0
        %353 = vadd.xlane.f32.xlu0 %v352
        %v354 = vpop.xlane.xlu0 %353
        %v355 = vsel %vm299, %v298, 0.0
        %356 = vadd.xlane.f32.xlu0 %v355
        %v357 = vpop.xlane.xlu0 %356
        %v362 = vlaneseq
        %v363 = vand.u32 %v362, 127
        %v364 = vlaneseq
        %v365 = vshrl.u32 %v364, 7
        %v366 = vsub.s32 %v363, %v365
        %v367 = vrot.slane %v348, %v366
        %v368 = vlaneseq
        %v369 = vshrl.u32 %v368, 7
        %v370 = vsub.s32 %v363, %v369
        %v371 = vrot.slane %v351, %v370
        %v372 = vlaneseq
        %v373 = vshrl.u32 %v372, 7
        %v374 = vsub.s32 %v363, %v373
        %v375 = vrot.slane %v354, %v374
        %v376 = vlaneseq
        %v377 = vshrl.u32 %v376, 7
        %v378 = vsub.s32 %v363, %v377
        %v379 = vrot.slane %v357, %v378
        %vm380 = vcmask 1041409
        %v381 = vsel %vm380, %v371, %v367
        %vm382 = vcmask 1042434
        %v383 = vsel %vm382, %v375, %v381
        %vm384 = vcmask 1043459
        %v385 = vsel %vm384, %v379, %v383
        %vm387 = vcmask 11264
        %v388 = vsel %vm387, %v385, 0.0
        %389 = vadd.xlane.f32.xlu0 %v388
        %v390 = vpop.xlane.xlu0 %389
        %v391 = vld [vmem:[%s2] sm:$0xf]
        %v392 = vmul.f32 %v390, %v391
        %vm393 = vcmask 3072
        %v394 = vsel %vm393, %v392, 0.0
        %v395 = vrot.slane %v394, 4
        %v396 = vadd.f32 %v394, %v395
        %v397 = vrot.slane %v396, 2
        %v398 = vadd.f32 %v396, %v397
        %v399 = vrot.slane %v398, 1
        %v400 = vadd.f32 %v398, %v399
        %vm401 = vcmask 0
        %402 = vst.msk [vmem:[%s281] sm:$0x1] %vm401, %v400
        %v403 = vsel %vm299, %v345, 0.0
        %404 = vadd.xlane.f32.xlu0 %v403
        %v405 = vpop.xlane.xlu0 %404
        %v406 = vsel %vm299, %v405, 0.0
        %v407 = vrot.slane %v406, 4
        %v408 = vadd.f32 %v406, %v407
        %v409 = vrot.slane %v408, 2
        %v410 = vadd.f32 %v408, %v409
        %v411 = vrot.slane %v410, 1
        %v412 = vadd.f32 %v410, %v411
        %413 = vst.msk [vmem:[%s275] sm:$0x1] %vm401, %v412
        %p414 = scmp.lt.s32.totalorder %s23, 1
        %s415 = scalar_select %p414, %s23, 1
        %p416 = scmp.lt.s32.totalorder %s24, 0
        %s417 = scalar_select %p416, %s24, 0
        %s418 = sadd.s32 %s417, %s415
        %s419 = scalar_lea.vmem %s3, %s418
        %p420 = scmp.lt.s32.totalorder %s23, 1
        %s421 = scalar_select %p420, %s23, 1
        %p422 = scmp.lt.s32.totalorder %s24, 0
        %s423 = scalar_select %p422, %s24, 0
        %s424 = sadd.s32 %s423, %s421
        %s425 = scalar_lea.vmem %s4, %s424
        // Predicated region
        $region37: #{tpu_custom_call.1} parent=31 // pred_check
          %p426 = pneg %p128
        $region38: #{tpu_custom_call.1} parent=31 // pred_check_branch
          %428 = sbr.rel (%p426) target = $region40
        $region39: #{tpu_custom_call.1} parent=31 // pred_region
          _
        $region40: #{tpu_custom_call.1} parent=31 // pred_fallthru
          _
        // Predicated region
        $region41: #{tpu_custom_call.1} parent=31 // pred_check
          %p429 = pneg %p156
        $region42: #{tpu_custom_call.1} parent=31 // pred_check_branch
          %431 = sbr.rel (%p429) target = $region44
        $region43: #{tpu_custom_call.1} parent=31 // pred_region
          _
        $region44: #{tpu_custom_call.1} parent=31 // pred_fallthru
          _
      $region32: #{tpu_custom_call.1} parent=5 // pred_fallthru
        _
      %p432 = scmp.le.s32.totalorder 2, %s14
      // Predicated region
      $region45: #{tpu_custom_call.1} parent=5 // pred_check
        %p433 = pneg %p432
      $region46: #{tpu_custom_call.1} parent=5 // pred_check_branch
        %435 = sbr.rel (%p433) target = $region48
      $region47: #{tpu_custom_call.1} parent=5 // pred_region
        %s436 = ssub.s32 %s14, 2
        // Predicated region
        $region49: #{tpu_custom_call.1} parent=47 // pred_check
          %p437 = pneg %p134
        $region50: #{tpu_custom_call.1} parent=47 // pred_check_branch
          %439 = sbr.rel (%p437) target = $region52
        $region51: #{tpu_custom_call.1} parent=47 // pred_region
          %p440 = scmp.lt.s32.totalorder %s25, 1
          %s441 = scalar_select %p440, %s25, 1
          %p442 = scmp.lt.s32.totalorder %s26, 0
          %s443 = scalar_select %p442, %s26, 0
          %s444 = sadd.s32 %s443, %s441
          %s445 = scalar_lea.vmem %s3, %s444
        $region52: #{tpu_custom_call.1} parent=47 // pred_fallthru
          _
        // Predicated region
        $region53: #{tpu_custom_call.1} parent=47 // pred_check
          %p446 = pneg %p162
        $region54: #{tpu_custom_call.1} parent=47 // pred_check_branch
          %448 = sbr.rel (%p446) target = $region56
        $region55: #{tpu_custom_call.1} parent=47 // pred_region
          %p449 = scmp.lt.s32.totalorder %s25, 1
          %s450 = scalar_select %p449, %s25, 1
          %p451 = scmp.lt.s32.totalorder %s26, 0
          %s452 = scalar_select %p451, %s26, 0
          %s453 = sadd.s32 %s452, %s450
          %s454 = scalar_lea.vmem %s4, %s453
        $region56: #{tpu_custom_call.1} parent=47 // pred_fallthru
          _
      $region48: #{tpu_custom_call.1} parent=5 // pred_fallthru
        _
    $region6: #{tpu_custom_call.1} parent=1 // loop_footer
      %s18 = sadd.s32 1, %s14
    $region7: #{tpu_custom_call.1} parent=1 // loop_footer_branch
      %13 = sbr.rel target = $region3
    $region8: #{tpu_custom_call.1} parent=1 // loop_exit
      _
    %455 = vsyncpa [#allocation3], 1
    %s456 = scalar_lea.sflag [#allocation3], 1
    %457 = vsyncpa %s456, 1

</llo_original>
